<compile_context>
chip_gen: v7x
topology: tpu7x:2x2x1
jax: 0.10.0
libtpu: 0.0.40
codegen_flags: <defaults>
</compile_context>

<pallas_src>
import math

import jax
import jax.numpy as jnp
from jax import lax
from jax.experimental import pallas as pl
from jax.experimental.pallas import tpu as pltpu


_TM_CAP = 512      # rows per tile
_TN_CAP = 512      # output (ntoken) columns per tile
_TK_CAP = 2048     # contraction (d_model) span kept fully in VMEM


def _round_up(x: int, m: int) -> int:
    return (x + m - 1) // m * m


def _fit_tile(size: int, cap: int, unit: int):
    """Return (tile, padded) with tile % unit == 0, tile <= cap, tile | padded.

    Pads only to `unit` granularity when possible; only falls back to extra
    padding (up to a multiple of `cap`) when no reasonably large divisor exists.
    """
    padded = _round_up(size, unit)
    if padded <= cap:
        return padded, padded
    for t in range(cap - cap % unit, unit - 1, -unit):
        if t < cap // 2:
            break
        if padded % t == 0:
            return t, padded
    return cap, _round_up(size, cap)


# ----------------------------------------------------------------------------
# Kernels
# ----------------------------------------------------------------------------
def _linear_kernel(x_ref, w_ref, b_ref, o_ref):
    """Single-k-block path: whole d_model is resident; no accumulator RMW.

    x_ref: (tm, k_pad) bf16      w_ref: (tn, k_pad) bf16 (native Linear layout)
    b_ref: (1, tn) f32           o_ref: (tm, tn) out dtype
    """
    o_ref[...] = (
        lax.dot_general(
            x_ref[...],
            w_ref[...],
            dimension_numbers=(((1,), (1,)), ((), ())),
            preferred_element_type=jnp.float32,
        )
        + b_ref[...]
    ).astype(o_ref.dtype)


def _linear_kernel_acc(x_ref, w_ref, b_ref, o_ref, acc_ref):
    """Fallback for very large d_model: k-tiled reduction with f32 accumulator.

    Bias seeds the accumulator on k == 0 (no finalize-path add).
    """
    k = pl.program_id(2)

    @pl.when(k == 0)
    def _():
        acc_ref[...] = jnp.broadcast_to(b_ref[...], acc_ref.shape).astype(jnp.float32)

    acc_ref[...] += lax.dot_general(
        x_ref[...],
        w_ref[...],
        dimension_numbers=(((1,), (1,)), ((), ())),
        preferred_element_type=jnp.float32,
    )

    @pl.when(k == pl.num_programs(2) - 1)
    def _():
        o_ref[...] = acc_ref[...].astype(o_ref.dtype)


# ----------------------------------------------------------------------------
# Wrapper
# ----------------------------------------------------------------------------
def classification_head(x, weight, bias, out_dtype=None, tk_cap=_TK_CAP):
    """y = x @ weight.T + bias over the last axis of x (nn.Linear semantics).

    x:      (..., d_model)
    weight: (ntoken, d_model)  -- PyTorch nn.Linear layout (never transposed)
    bias:   (ntoken,)
    returns (..., ntoken) in `out_dtype` (default: x.dtype)
    """
    d_model = x.shape[-1]
    ntoken = weight.shape[0]
    lead = x.shape[:-1]
    n_rows = math.prod(lead) if lead else 1
    out_dtype = x.dtype if out_dtype is None else out_dtype

    tm, m_pad = _fit_tile(n_rows, _TM_CAP, 16)     # bf16 sublane pack
    tn, n_pad = _fit_tile(ntoken, _TN_CAP, 128)    # lane-dense output
    tk, k_pad = _fit_tile(d_model, tk_cap, 128)    # lane-dense contraction

    # --- Inputs: cast / pad only when actually needed --------------------
    x2d = x.reshape(n_rows, d_model)
    if x2d.dtype != jnp.bfloat16:
        x2d = x2d.astype(jnp.bfloat16)
    if (m_pad, k_pad) != (n_rows, d_model):
        x2d = jnp.pad(x2d, ((0, m_pad - n_rows), (0, k_pad - d_model)))

    w_p = weight if weight.dtype == jnp.bfloat16 else weight.astype(jnp.bfloat16)
    if (n_pad, k_pad) != (ntoken, d_model):
        w_p = jnp.pad(w_p, ((0, n_pad - ntoken), (0, k_pad - d_model)))

    b_p = bias if bias.dtype == jnp.float32 else bias.astype(jnp.float32)
    if n_pad != ntoken:
        b_p = jnp.pad(b_p, (0, n_pad - ntoken))
    b_p = b_p.reshape(1, n_pad)

    cost = pl.CostEstimate(
        flops=2 * m_pad * n_pad * k_pad,
        transcendentals=0,
        bytes_accessed=(m_pad * k_pad * 2 + n_pad * k_pad * 2 + n_pad * 4
                        + m_pad * n_pad * jnp.dtype(out_dtype).itemsize),
    )

    single_k = (k_pad == tk)

    if single_k:
        # Grid (j, i): ntoken outermost -> the weight tile (indexed by j only)
        # is DMA'd once per j even when rows span several i-blocks.
        grid = (n_pad // tn, m_pad // tm)
        grid_spec = pltpu.PrefetchScalarGridSpec(
            num_scalar_prefetch=0,
            grid=grid,
            in_specs=[
                pl.BlockSpec((tm, k_pad), lambda j, i: (i, 0)),   # x tile
                pl.BlockSpec((tn, k_pad), lambda j, i: (j, 0)),   # weight tile
                pl.BlockSpec((1, tn), lambda j, i: (0, j)),       # bias tile
            ],
            out_specs=pl.BlockSpec((tm, tn), lambda j, i: (i, j)),
            scratch_shapes=[],
        )
        kernel = _linear_kernel
        dims = ("parallel", "parallel")
    else:
        # Large d_model fallback: k-tiled reduction (k last, sequential).
        grid = (n_pad // tn, m_pad // tm, k_pad // tk)
        grid_spec = pltpu.PrefetchScalarGridSpec(
            num_scalar_prefetch=0,
            grid=grid,
            in_specs=[
                pl.BlockSpec((tm, tk), lambda j, i, k: (i, k)),
                pl.BlockSpec((tn, tk), lambda j, i, k: (j, k)),
                pl.BlockSpec((1, tn), lambda j, i, k: (0, j)),
            ],
            out_specs=pl.BlockSpec((tm, tn), lambda j, i, k: (i, j)),
            scratch_shapes=[pltpu.VMEM((tm, tn), jnp.float32)],
        )
        kernel = _linear_kernel_acc
        dims = ("parallel", "parallel", "arbitrary")

    out2d = pl.pallas_call(
        kernel,
        out_shape=jax.ShapeDtypeStruct((m_pad, n_pad), out_dtype),
        grid_spec=grid_spec,
        compiler_params=pltpu.CompilerParams(
            dimension_semantics=dims,
            vmem_limit_bytes=48 * 1024 * 1024,
        ),
        cost_estimate=cost,
    )(x2d, w_p, b_p)

    return out2d[:n_rows, :ntoken].reshape(*lead, ntoken)


def init_classification_head(key, d_model, ntoken):
    """Matches ClassificationHead.init_weights: weight ~ U(-0.1, 0.1), bias = 0.

    Weight is cast to bf16 once here (persistent MXU-ready layout/dtype) so the
    per-call wrapper never re-casts or re-pads it when d_model is 128-aligned.
    """
    initrange = 0.1
    weight = jax.random.uniform(
        key, (ntoken, d_model), minval=-initrange, maxval=initrange,
        dtype=jnp.float32,
    ).astype(jnp.bfloat16)
    bias = jnp.zeros((ntoken,), dtype=jnp.float32)
    return weight, bias


if __name__ == "__main__":
    key = jax.random.PRNGKey(0)
    k_w, k_x, k_w2, k_x2 = jax.random.split(key, 4)

    # --- Small shapes implied by the transformer-classifier setting -------
    seq, batch, d_model, ntoken = 8, 2, 32, 16
    weight, bias = init_classification_head(k_w, d_model, ntoken)
    x = jax.random.normal(k_x, (seq, batch, d_model), dtype=jnp.float32)

    y = classification_head(x, weight, bias)
    y = jax.block_until_ready(y)

    y_ref = x @ weight.astype(jnp.float32).T + bias
    assert y.shape == (seq, batch, ntoken)
    assert jnp.allclose(y, y_ref, atol=2e-2, rtol=2e-2), float(
        jnp.max(jnp.abs(y - y_ref))
    )

    # --- Larger shape: multi-tile (j, i) grid, ntoken padding, 1 k block ---
    seq2, batch2, d_model2, ntoken2 = 48, 5, 640, 1000
    weight2, bias2 = init_classification_head(k_w2, d_model2, ntoken2)
    x2 = jax.random.normal(k_x2, (seq2, batch2, d_model2), dtype=jnp.float32)

    y2 = classification_head(x2, weight2, bias2)
    y2 = jax.block_until_ready(y2)

    y2_ref = x2 @ weight2.astype(jnp.float32).T + bias2
    assert y2.shape == (seq2, batch2, ntoken2)
    assert jnp.allclose(y2, y2_ref, atol=3e-2, rtol=3e-2), float(
        jnp.max(jnp.abs(y2 - y2_ref))
    )

    # --- Same shape, artificially small tk cap: exercises the k-tiled
    #     accumulator fallback path (bias seeded into acc on k == 0) ---------
    y3 = classification_head(x2, weight2, bias2, tk_cap=256)
    y3 = jax.block_until_ready(y3)
    assert jnp.allclose(y3, y2_ref, atol=3e-2, rtol=3e-2), float(
        jnp.max(jnp.abs(y3 - y2_ref))
    )

    print("KERNEL_OK")
</pallas_src>

<mosaic_0001>
module attributes {stable_mosaic.version = 11 : i64} {
  func.func @_linear_kernel(%arg0: i32, %arg1: i32, %arg2: memref<16x128xbf16, #tpu.memory_space<vmem>>, %arg3: memref<128x128xbf16, #tpu.memory_space<vmem>>, %arg4: memref<1x128xf32, #tpu.memory_space<vmem>>, %arg5: memref<16x128xf32, #tpu.memory_space<vmem>>) attributes {dimension_semantics = [#tpu.dimension_semantics<parallel>, #tpu.dimension_semantics<parallel>], iteration_bounds = array<i64: 1, 1>, scalar_prefetch = 0 : i64, scratch_operands = 0 : i64, tpu.core_type = #tpu.core_type<tc>, window_params = [{transform_indices = @transform_0, window_bounds = array<i64: 16, 128>}, {transform_indices = @transform_1, window_bounds = array<i64: 128, 128>}, {transform_indices = @transform_2, window_bounds = array<i64: 1, 128>}, {transform_indices = @transform_3, window_bounds = array<i64: 16, 128>}]} {
    %c0 = arith.constant 0 : index
    %c0_0 = arith.constant 0 : index
    %0 = vector.load %arg2[%c0, %c0_0] : memref<16x128xbf16, #tpu.memory_space<vmem>>, vector<16x128xbf16>
    %c0_1 = arith.constant 0 : index
    %c0_2 = arith.constant 0 : index
    %1 = vector.load %arg3[%c0_1, %c0_2] : memref<128x128xbf16, #tpu.memory_space<vmem>>, vector<128x128xbf16>
    %cst = arith.constant dense<0.000000e+00> : vector<16x128xf32>
    %2 = tpu.matmul %0, %1, %cst {dimension_numbers = #tpu.dot_dimension_numbers<[1], [1], [0], [0], [0, 0, 1, 0], [], []>} : vector<16x128xbf16>, vector<128x128xbf16>, vector<16x128xf32> -> vector<16x128xf32>
    %c0_3 = arith.constant 0 : index
    %c0_4 = arith.constant 0 : index
    %3 = vector.load %arg4[%c0_3, %c0_4] : memref<1x128xf32, #tpu.memory_space<vmem>>, vector<1x128xf32>
    %4 = vector.broadcast %3 : vector<1x128xf32> to vector<16x128xf32>
    %5 = arith.addf %2, %4 : vector<16x128xf32>
    %c0_5 = arith.constant 0 : index
    %c0_6 = arith.constant 0 : index
    %6 = vector.load %arg5[%c0_5, %c0_6] : memref<16x128xf32, #tpu.memory_space<vmem>>, vector<16x128xf32>
    tpu.vector_store %arg5[%c0_5, %c0_6], %5 {strides = array<i32>} : memref<16x128xf32, #tpu.memory_space<vmem>>, vector<16x128xf32>,
    return
  }
  func.func @transform_0(%arg0: i32, %arg1: i32) -> (i32, i32) {
    %c0_i32 = arith.constant 0 : i32
    %c0_i32_0 = arith.constant 0 : i32
    return %arg1, %c0_i32 : i32, i32
  }
  func.func @transform_1(%arg0: i32, %arg1: i32) -> (i32, i32) {
    %c0_i32 = arith.constant 0 : i32
    %c0_i32_0 = arith.constant 0 : i32
    return %arg0, %c0_i32 : i32, i32
  }
  func.func @transform_2(%arg0: i32, %arg1: i32) -> (i32, i32) {
    %c0_i32 = arith.constant 0 : i32
    %c0_i32_0 = arith.constant 0 : i32
    return %c0_i32, %arg0 : i32, i32
  }
  func.func @transform_3(%arg0: i32, %arg1: i32) -> (i32, i32) {
    %c0_i32 = arith.constant 0 : i32
    return %arg1, %arg0 : i32, i32
  }
}

</mosaic_0001>

<llo_original>
// kernel: tpu_custom_call.1
$region0: #{tpu_custom_call.1}
  #allocation0 [shape = 'u32[]', space=smem, size = 0x4, offset = 0x4, fixed_abs, tag = 'smem constant byte address 0x4 - core index']
  #allocation1 [shape = 'u32[144,128]{1,0:T(1,128)}', space=vmem, size = 0x12000, scoped, tag = 'internal scratch']
  %s0 = inlined_call_operand.hbm [shape: bf16[16,128], index: 0, kind: input, shape index: {}]
  %s1 = inlined_call_operand.hbm [shape: bf16[128,128], index: 1, kind: input, shape index: {}]
  %s2 = inlined_call_operand.vmem [shape: f32[1,128], index: 2, kind: input, shape index: {}]
  %s3 = inlined_call_operand.hbm [shape: f32[16,128], index: 3, kind: output, shape index: {}]
  %s4 = sld [smem:[#allocation0]]
  $region30: #{tpu_custom_call.1} parent=0
    _
  %s6 = ssub.s32 1, %s4
  %s7 = scalar_select 0, %s6, %s4
  $region1: #{tpu_custom_call.1} parent=0
    #allocation2 [shape = 'u8[4096]{0}', space=vmem, size = 0x1000, scoped, tag = 'input window, operand 0, single buffered']
    #allocation3 [shape = 's32[1]{0}', space=sflag, size = 0x4, scoped, tag = 'scoped memory for tpu_custom_call.1']
    #allocation4 [shape = 's32[1]{0}', space=sflag, size = 0x4, scoped, tag = 'scoped memory for tpu_custom_call.1']
    #allocation5 [shape = 'u8[32768]{0}', space=vmem, size = 0x8000, scoped, tag = 'input window, operand 1, single buffered']
    #allocation6 [shape = 's32[1]{0}', space=sflag, size = 0x4, scoped, tag = 'scoped memory for tpu_custom_call.1']
    #allocation7 [shape = 'u8[8192]{0}', space=vmem, size = 0x2000, scoped, tag = 'output window, operand 0, single buffered']
    %8 = vsyncpa [#allocation3], 0
    %9 = vsyncpa [#allocation6], 0
    %10 = vsyncpa [#allocation4], 0
    // Predicated region
    $region2: #{tpu_custom_call.1} parent=1 // pred_check
      _
    $region3: #{tpu_custom_call.1} parent=1 // pred_check_branch
      %12 = sbr.rel (0) target = $region5
    $region4: #{tpu_custom_call.1} parent=1 // pred_region
      %s14 = ssub.s32 128, 128
      %15 = vsyncadd [#allocation3], %s14
      %s16 = sshll.u32 [#allocation2], 4
      %s17 = int_to_ptr.vmem [resolvable:$true] %s16
      %22 = dma.hbm_to_vmem [thread:$0]  %s0, 128, %s17, [#allocation3], 64, 64, 4
    $region5: #{tpu_custom_call.1} parent=1 // pred_fallthru
      _
    // Predicated region
    $region6: #{tpu_custom_call.1} parent=1 // pred_check
      _
    $region7: #{tpu_custom_call.1} parent=1 // pred_check_branch
      %24 = sbr.rel (0) target = $region9
    $region8: #{tpu_custom_call.1} parent=1 // pred_region
      %s26 = ssub.s32 1024, 1024
      %27 = vsyncadd [#allocation6], %s26
      %s28 = sshll.u32 [#allocation5], 4
      %s29 = int_to_ptr.vmem [resolvable:$true] %s28
      %34 = dma.hbm_to_vmem [thread:$0]  %s1, 1024, %s29, [#allocation6], 64, 64, 4
    $region9: #{tpu_custom_call.1} parent=1 // pred_fallthru
      _
    // Predicated region
    $region10: #{tpu_custom_call.1} parent=1 // pred_check
      _
    $region11: #{tpu_custom_call.1} parent=1 // pred_check_branch
      %36 = sbr.rel (0) target = $region13
    $region12: #{tpu_custom_call.1} parent=1 // pred_region
      _
    $region13: #{tpu_custom_call.1} parent=1 // pred_fallthru
      _
    // Predicated region
    $region14: #{tpu_custom_call.1} parent=1 // pred_check
      _
    $region15: #{tpu_custom_call.1} parent=1 // pred_check_branch
      %38 = sbr.rel (0) target = $region17
    $region16: #{tpu_custom_call.1} parent=1 // pred_region
      %39 = dma.done [#allocation3], 128
    $region17: #{tpu_custom_call.1} parent=1 // pred_fallthru
      _
    // Predicated region
    $region18: #{tpu_custom_call.1} parent=1 // pred_check
      _
    $region19: #{tpu_custom_call.1} parent=1 // pred_check_branch
      %41 = sbr.rel (0) target = $region21
    $region20: #{tpu_custom_call.1} parent=1 // pred_region
      %42 = dma.done [#allocation6], 1024
    $region21: #{tpu_custom_call.1} parent=1 // pred_fallthru
      _
    %v44 = vld [vmem:[#allocation2] sm:$0xf]
    %v45 = vld [vmem:[#allocation2 + $0x4] sm:$0xf]
    %v46 = vld [vmem:[#allocation5] sm:$0xf]
    %v47 = vld [vmem:[#allocation5 + $0x4] sm:$0xf]
    %v48 = vld [vmem:[#allocation5 + $0x8] sm:$0xf]
    %v49 = vld [vmem:[#allocation5 + $0xc] sm:$0xf]
    %v50 = vld [vmem:[#allocation5 + $0x10] sm:$0xf]
    %v51 = vld [vmem:[#allocation5 + $0x14] sm:$0xf]
    %v52 = vld [vmem:[#allocation5 + $0x18] sm:$0xf]
    %v53 = vld [vmem:[#allocation5 + $0x1c] sm:$0xf]
    %v54 = vld [vmem:[#allocation5 + $0x20] sm:$0xf]
    %v55 = vld [vmem:[#allocation5 + $0x24] sm:$0xf]
    %v56 = vld [vmem:[#allocation5 + $0x28] sm:$0xf]
    %v57 = vld [vmem:[#allocation5 + $0x2c] sm:$0xf]
    %v58 = vld [vmem:[#allocation5 + $0x30] sm:$0xf]
    %v59 = vld [vmem:[#allocation5 + $0x34] sm:$0xf]
    %v60 = vld [vmem:[#allocation5 + $0x38] sm:$0xf]
    %v61 = vld [vmem:[#allocation5 + $0x3c] sm:$0xf]
    %v62 = vld [vmem:[%s2] sm:$0x1]
    %v64 = vlaneseq
    %v65 = vshrl.u32 %v64, 7
    %v66 = vsub.s32 0, %v65
    %v67 = vrot.slane %v62, %v66
    %v71 = vunpack.c.l.b16 %v44
    %v72 = vunpack.c.l.b16 %v45
    %v73 = vpack.c.b16 %v72, %v71
    %v91 = vunpack.c.l.b16 %v46
    %v92 = vunpack.c.l.b16 %v47
    %v93 = vunpack.c.l.b16 %v48
    %v94 = vunpack.c.l.b16 %v49
    %v95 = vunpack.c.l.b16 %v50
    %v96 = vunpack.c.l.b16 %v51
    %v97 = vunpack.c.l.b16 %v52
    %v98 = vunpack.c.l.b16 %v53
    %v99 = vunpack.c.l.b16 %v54
    %v100 = vunpack.c.l.b16 %v55
    %v101 = vunpack.c.l.b16 %v56
    %v102 = vunpack.c.l.b16 %v57
    %v103 = vunpack.c.l.b16 %v58
    %v104 = vunpack.c.l.b16 %v59
    %v105 = vunpack.c.l.b16 %v60
    %v106 = vunpack.c.l.b16 %v61
    %v107 = vpack.c.b16 %v92, %v91
    %v108 = vpack.c.b16 %v94, %v93
    %v109 = vpack.c.b16 %v96, %v95
    %v110 = vpack.c.b16 %v98, %v97
    %v111 = vpack.c.b16 %v100, %v99
    %v112 = vpack.c.b16 %v102, %v101
    %v113 = vpack.c.b16 %v104, %v103
    %v114 = vpack.c.b16 %v106, %v105
    %123 = vmatprep.subr.bf16.mxu0 0
    %124 = vmatpush1.bf16.xpose.msra.mxu0 %v107
    %125 = vmatprep.subr.bf16.mxu0 0
    %126 = vmatpush1.bf16.xpose.msra.mxu0 %v108
    %127 = vmatprep.subr.bf16.mxu0 0
    %128 = vmatpush1.bf16.xpose.msra.mxu0 %v109
    %129 = vmatprep.subr.bf16.mxu0 0
    %130 = vmatpush1.bf16.xpose.msra.mxu0 %v110
    %131 = vmatprep.subr.bf16.mxu0 0
    %132 = vmatpush1.bf16.xpose.msra.mxu0 %v111
    %133 = vmatprep.subr.bf16.mxu0 0
    %134 = vmatpush1.bf16.xpose.msra.mxu0 %v112
    %135 = vmatprep.subr.bf16.mxu0 0
    %136 = vmatpush1.bf16.xpose.msra.mxu0 %v113
    %137 = vmatprep.subr.bf16.mxu0 0
    %138 = vmatpush1.bf16.xpose.msra.mxu0 %v114
    %139 = vmatprep.subr.bf16.mxu0 0
    %140 = vmatpush1.bf16.xpose.msra.mxu0 0
    %141 = vmatprep.subr.bf16.mxu0 0
    %142 = vmatpush1.bf16.xpose.msra.mxu0 0
    %143 = vmatprep.subr.bf16.mxu0 0
    %144 = vmatpush1.bf16.xpose.msra.mxu0 0
    %145 = vmatprep.subr.bf16.mxu0 0
    %146 = vmatpush1.bf16.xpose.msra.mxu0 0
    %147 = vmatprep.subr.bf16.mxu0 0
    %148 = vmatpush1.bf16.xpose.msra.mxu0 0
    %149 = vmatprep.subr.bf16.mxu0 0
    %150 = vmatpush1.bf16.xpose.msra.mxu0 0
    %151 = vmatprep.subr.bf16.mxu0 0
    %152 = vmatpush1.bf16.xpose.msra.mxu0 0
    %153 = vmatprep.subr.bf16.mxu0 0
    %154 = vmatpush1.bf16.xpose.msra.mxu0 0
    %155 = vmatprep.mubr.bf16.mxu0 0
    %156 = vmatmul.mubr.bf16.gmra.mrb[0].mxu0 %v73
    %v157 = vpop.f32.mrb[0].mxu0
    %v158 = vadd.f32 %v67, %v157
    %v159 = vpop.f32.mrb[0].mxu0
    %v160 = vpop.f32.mrb[0].mxu0
    %v161 = vadd.f32 %v67, %v160
    %v162 = vpop.f32.mrb[0].mxu0
    %163 = vdwg.mxu0
    %164 = vst [vmem:[#allocation7] sm:$0xff] %v158
    %165 = vst [vmem:[#allocation7 + $0x8] sm:$0xff] %v161
    // Predicated region
    $region22: #{tpu_custom_call.1} parent=1 // pred_check
      _
    $region23: #{tpu_custom_call.1} parent=1 // pred_check_branch
      %167 = sbr.rel (0) target = $region25
    $region24: #{tpu_custom_call.1} parent=1 // pred_region
      %s169 = ssub.s32 256, 256
      %170 = vsyncadd [#allocation4], %s169
      %s171 = sshll.u32 [#allocation7], 4
      %s172 = int_to_ptr.vmem [resolvable:$true] %s171
      %177 = dma.vmem_to_hbm [thread:$0]  %s172, 256, %s3, [#allocation4], 128, 128, 8
    $region25: #{tpu_custom_call.1} parent=1 // pred_fallthru
      _
    // Predicated region
    $region26: #{tpu_custom_call.1} parent=1 // pred_check
      _
    $region27: #{tpu_custom_call.1} parent=1 // pred_check_branch
      %179 = sbr.rel (0) target = $region29
    $region28: #{tpu_custom_call.1} parent=1 // pred_region
      %180 = dma.done [#allocation4], 256
    $region29: #{tpu_custom_call.1} parent=1 // pred_fallthru
      _
    %181 = vsyncpa [#allocation3], 1
    %182 = vsyncpa [#allocation6], 1
    %183 = vsyncpa [#allocation4], 1

</llo_original>
